<compile_context>
chip_gen: v6e
topology: v6e:2x2x1
jax: 0.10.0
libtpu: 0.0.40
codegen_flags: <defaults>
</compile_context>

<pallas_src>
import functools

import jax
import jax.numpy as jnp
from jax import lax
from jax.experimental import pallas as pl
from jax.experimental.pallas import tpu as pltpu

LN_EPS = 1e-5  # PyTorch nn.LayerNorm default


def _round_up(a, b):
    return (a + b - 1) // b * b


def _ffn_kernel(x_ref, gamma_ref, beta_ref, w1_ref, b1_ref, w2_ref, b2_ref,
                o_ref, *, d_real, t_h):
    # x_ref: (tm, Dp) row tile; weights are full-size, single-buffered, resident.
    tm, d_pad = x_ref.shape
    h_pad = w1_ref.shape[1]

    x = x_ref[...].astype(jnp.float32)

    # --- LayerNorm over the real D lanes (padded lanes of x/gamma/beta are 0) ---
    inv_d = 1.0 / d_real
    mean = jnp.sum(x, axis=-1, keepdims=True) * inv_d
    xc = x - mean
    if d_pad != d_real:
        lane = lax.broadcasted_iota(jnp.int32, (1, d_pad), 1)
        xc = jnp.where(lane < d_real, xc, 0.0)
    var = jnp.sum(xc * xc, axis=-1, keepdims=True) * inv_d
    xn = xc * lax.rsqrt(var + LN_EPS) * gamma_ref[...] + beta_ref[...]
    xn_m = xn.astype(w1_ref.dtype)

    # --- Linear(D->H) + SiLU + Linear(H->D), hidden dim chunked by t_h ---
    # Keeps the f32 intermediate at (tm, t_h) so it stays in vregs instead of
    # spilling a (tm, H) slab to VMEM.
    def h_chunk(hs, acc):
        h = jnp.dot(xn_m, w1_ref[:, pl.ds(hs, t_h)],
                    preferred_element_type=jnp.float32) + b1_ref[:, pl.ds(hs, t_h)]
        h = h * jax.nn.sigmoid(h)          # SiLU; sigmoid lowers to the EUP slot
        # TODO(synk): Dropout omitted (inference semantics; identity in eval).
        return acc + jnp.dot(h.astype(w2_ref.dtype), w2_ref[pl.ds(hs, t_h), :],
                             preferred_element_type=jnp.float32)

    n_chunks = h_pad // t_h
    acc = jnp.zeros((tm, d_pad), jnp.float32)
    if n_chunks <= 4:
        for k in range(n_chunks):          # short fixed trip count: static unroll
            acc = h_chunk(k * t_h, acc)
    else:
        acc = lax.fori_loop(
            0, n_chunks,
            lambda k, a: h_chunk(pl.multiple_of(k * t_h, t_h), a), acc)

    o_ref[...] = (acc + b2_ref[...]).astype(o_ref.dtype)


@functools.partial(
    jax.jit, static_argnames=("tm", "matmul_dtype", "vmem_limit_bytes"))
def feed_forward_module(x, gamma, beta, w1, b1, w2, b2, *,
                        tm=512,
                        matmul_dtype=jnp.bfloat16,
                        vmem_limit_bytes=None):
    """x: (B, T, D).  Parameters:
       gamma, beta: (D,)      LayerNorm affine
       w1: (D, H), b1: (H,)   first Linear (input-major, i.e. PyTorch weight.T)
       w2: (H, D), b2: (D,)   second Linear
       Pass w1/w2 already in `matmul_dtype` (e.g. bf16) to avoid a per-call cast.
    """
    B, T, D = x.shape
    H = w1.shape[1]
    N = B * T

    # Lane-dense feature dims (multiples of 128) -> unmasked stores, full MXU cols.
    Dp = _round_up(D, 128)
    Hp = _round_up(H, 128)

    # Hidden-dim chunk: largest of {512, 256, 128} that divides Hp.
    if Hp % 512 == 0:
        tH = 512
    elif Hp % 256 == 0:
        tH = 256
    else:
        tH = 128

    # Row tile: large, 8-aligned, but capped so the row grid has >= 2 steps
    # whenever possible (v7x megacore: 'parallel' shards the grid over 2 TCs).
    cap = _round_up(max((N + 1) // 2, 8), 8) if N > 8 else 8
    tm_eff = max(8, min(_round_up(tm, 8), cap))
    Np = _round_up(N, tm_eff)

    x2 = x.reshape(N, D)
    if Np != N or Dp != D:                       # pad only when actually needed
        x2 = jnp.pad(x2, ((0, Np - N), (0, Dp - D)))

    def pad_vec(v, n):
        v = v.reshape(1, -1).astype(jnp.float32)
        return jnp.pad(v, ((0, 0), (0, n - v.shape[1]))) if v.shape[1] != n else v

    gamma2 = pad_vec(gamma, Dp)
    beta2 = pad_vec(beta, Dp)
    b1_2 = pad_vec(b1, Hp)
    b2_2 = pad_vec(b2, Dp)

    # No-op if the caller already stores weights in matmul_dtype.
    w1_c = w1 if w1.dtype == matmul_dtype else w1.astype(matmul_dtype)
    w2_c = w2 if w2.dtype == matmul_dtype else w2.astype(matmul_dtype)
    if (Dp, Hp) != (D, H):
        w1_c = jnp.pad(w1_c, ((0, Dp - D), (0, Hp - H)))
        w2_c = jnp.pad(w2_c, ((0, Hp - H), (0, Dp - D)))

    grid = (Np // tm_eff,)

    if vmem_limit_bytes is None:
        wb = jnp.dtype(matmul_dtype).itemsize
        xb = jnp.dtype(x.dtype).itemsize
        need = (2 * Dp * Hp * wb                      # w1 + w2, single-buffered
                + (3 * Dp + Hp) * 4                   # gamma/beta/b1/b2 (f32)
                + 2 * 2 * tm_eff * Dp * xb            # x + out tiles, double-buffered
                + tm_eff * (2 * Dp + tH) * 4)         # xn, acc, h chunk (f32)
        vmem_limit_bytes = int(min(max(need + (16 << 20), 32 << 20), 112 << 20))

    kernel = functools.partial(_ffn_kernel, d_real=D, t_h=tH)
    const = dict(pipeline_mode=pl.Buffered(1))  # grid-invariant -> single-buffer

    out = pl.pallas_call(
        kernel,
        out_shape=jax.ShapeDtypeStruct((Np, Dp), x.dtype),
        grid_spec=pltpu.PrefetchScalarGridSpec(
            num_scalar_prefetch=0,
            grid=grid,
            in_specs=[
                pl.BlockSpec((tm_eff, Dp), lambda i: (i, 0)),           # x rows
                pl.BlockSpec((1, Dp), lambda i: (0, 0), **const),       # gamma
                pl.BlockSpec((1, Dp), lambda i: (0, 0), **const),       # beta
                pl.BlockSpec((Dp, Hp), lambda i: (0, 0), **const),      # w1
                pl.BlockSpec((1, Hp), lambda i: (0, 0), **const),       # b1
                pl.BlockSpec((Hp, Dp), lambda i: (0, 0), **const),      # w2
                pl.BlockSpec((1, Dp), lambda i: (0, 0), **const),       # b2
            ],
            out_specs=pl.BlockSpec((tm_eff, Dp), lambda i: (i, 0)),
        ),
        compiler_params=pltpu.CompilerParams(
            dimension_semantics=("parallel",),
            vmem_limit_bytes=vmem_limit_bytes),
    )(x2, gamma2, beta2, w1_c, b1_2, w2_c, b2_2)

    if Np != N or Dp != D:
        out = out[:N, :D]
    return out.reshape(B, T, D)


def _reference(x, gamma, beta, w1, b1, w2, b2):
    xf = x.astype(jnp.float32)
    mean = jnp.mean(xf, axis=-1, keepdims=True)
    var = jnp.mean((xf - mean) ** 2, axis=-1, keepdims=True)
    xn = (xf - mean) / jnp.sqrt(var + LN_EPS) * gamma + beta
    h = xn @ w1 + b1
    h = h * jax.nn.sigmoid(h)
    return (h @ w2 + b2).astype(x.dtype)


def _make_params(key, D, H):
    k1, k2, k3, k4, k5, k6 = jax.random.split(key, 6)
    gamma = 1.0 + 0.1 * jax.random.normal(k5, (D,), jnp.float32)
    beta = 0.05 * jax.random.normal(k6, (D,), jnp.float32)
    w1 = jax.random.normal(k1, (D, H), jnp.float32) * (1.0 / jnp.sqrt(D))
    b1 = jax.random.normal(k2, (H,), jnp.float32) * 0.01
    w2 = jax.random.normal(k3, (H, D), jnp.float32) * (1.0 / jnp.sqrt(H))
    b2 = jax.random.normal(k4, (D,), jnp.float32) * 0.01
    return gamma, beta, w1, b1, w2, b2


if __name__ == "__main__":
    key = jax.random.PRNGKey(0)
    kx, kp, kx2, kp2 = jax.random.split(key, 4)

    # Small shapes consistent with the module: encoder_dim=32, expansion=2.
    B, T, D = 2, 8, 32
    H = 2 * D
    x = jax.random.normal(kx, (B, T, D), dtype=jnp.float32)
    gamma, beta, w1, b1, w2, b2 = _make_params(kp, D, H)
    y_ref = _reference(x, gamma, beta, w1, b1, w2, b2)

    # Default (perf) path: bf16 MXU operands, f32 accumulation.
    y = jax.block_until_ready(feed_forward_module(x, gamma, beta, w1, b1, w2, b2))
    assert y.shape == (B, T, D)
    assert jnp.allclose(y, y_ref, atol=3e-2, rtol=3e-2), "bf16-matmul path mismatch"

    # Full-f32 path: tight tolerance against the reference.
    y32 = jax.block_until_ready(
        feed_forward_module(x, gamma, beta, w1, b1, w2, b2,
                            matmul_dtype=jnp.float32))
    assert jnp.allclose(y32, y_ref, atol=1e-4, rtol=1e-4), "f32 path mismatch"

    # Non-divisible row count (N = 14) exercises the row-padding path.
    x_odd = x[:, :7]
    y_odd = jax.block_until_ready(
        feed_forward_module(x_odd, gamma, beta, w1, b1, w2, b2,
                            matmul_dtype=jnp.float32))
    y_odd_ref = _reference(x_odd, gamma, beta, w1, b1, w2, b2)
    assert y_odd.shape == (B, 7, D)
    assert jnp.allclose(y_odd, y_odd_ref, atol=1e-4, rtol=1e-4), "padded-row mismatch"

    # D not lane-aligned + multi-chunk hidden dim (D=96 -> Dp=128, H=384 -> 3 chunks).
    D2, H2 = 96, 4 * 96
    x_b = jax.random.normal(kx2, (B, T, D2), dtype=jnp.float32)
    p2 = _make_params(kp2, D2, H2)
    y_b = jax.block_until_ready(
        feed_forward_module(x_b, *p2, matmul_dtype=jnp.float32))
    y_b_ref = _reference(x_b, *p2)
    assert y_b.shape == (B, T, D2)
    assert jnp.allclose(y_b, y_b_ref, atol=1e-4, rtol=1e-4), "chunked-H mismatch"

    print("KERNEL_OK")
</pallas_src>

<mosaic_0001>
module attributes {stable_mosaic.version = 11 : i64} {
  func.func @_ffn_kernel(%arg0: i32, %arg1: memref<8x128xf32, #tpu.memory_space<vmem>>, %arg2: memref<1x128xf32, #tpu.memory_space<vmem>>, %arg3: memref<1x128xf32, #tpu.memory_space<vmem>>, %arg4: memref<128x128xbf16, #tpu.memory_space<vmem>>, %arg5: memref<1x128xf32, #tpu.memory_space<vmem>>, %arg6: memref<128x128xbf16, #tpu.memory_space<vmem>>, %arg7: memref<1x128xf32, #tpu.memory_space<vmem>>, %arg8: memref<8x128xf32, #tpu.memory_space<vmem>>) attributes {dimension_semantics = [#tpu.dimension_semantics<parallel>], iteration_bounds = array<i64: 2>, scalar_prefetch = 0 : i64, scratch_operands = 0 : i64, tpu.core_type = #tpu.core_type<tc>, window_params = [{transform_indices = @transform_0, window_bounds = array<i64: 8, 128>}, {pipeline_mode = #tpu.pipeline_mode<synchronous>, transform_indices = @transform_1, window_bounds = array<i64: 1, 128>}, {pipeline_mode = #tpu.pipeline_mode<synchronous>, transform_indices = @transform_2, window_bounds = array<i64: 1, 128>}, {pipeline_mode = #tpu.pipeline_mode<synchronous>, transform_indices = @transform_3, window_bounds = array<i64: 128, 128>}, {pipeline_mode = #tpu.pipeline_mode<synchronous>, transform_indices = @transform_4, window_bounds = array<i64: 1, 128>}, {pipeline_mode = #tpu.pipeline_mode<synchronous>, transform_indices = @transform_5, window_bounds = array<i64: 128, 128>}, {pipeline_mode = #tpu.pipeline_mode<synchronous>, transform_indices = @transform_6, window_bounds = array<i64: 1, 128>}, {transform_indices = @transform_7, window_bounds = array<i64: 8, 128>}]} {
    %c0 = arith.constant 0 : index
    %c0_0 = arith.constant 0 : index
    %0 = vector.load %arg1[%c0, %c0_0] : memref<8x128xf32, #tpu.memory_space<vmem>>, vector<8x128xf32>
    %cst = arith.constant dense<0.000000e+00> : vector<8xf32>
    %1 = vector.multi_reduction <add>, %0, %cst [1] : vector<8x128xf32> to vector<8xf32>
    %2 = vector.shape_cast %1 : vector<8xf32> to vector<8x1xf32>
    %cst_1 = arith.constant 3.125000e-02 : f32
    %3 = vector.broadcast %cst_1 : f32 to vector<8x1xf32>
    %4 = arith.mulf %2, %3 : vector<8x1xf32>
    %5 = vector.broadcast %4 : vector<8x1xf32> to vector<8x128xf32>
    %6 = arith.subf %0, %5 : vector<8x128xf32>
    %7 = tpu.iota {dimensions = array<i32: 1>} : vector<1x128xi32>
    %c32_i32 = arith.constant 32 : i32
    %8 = vector.broadcast %c32_i32 : i32 to vector<1x128xi32>
    %9 = arith.cmpi slt, %7, %8 : vector<1x128xi32>
    %cst_2 = arith.constant 0.000000e+00 : f32
    %10 = vector.shape_cast %9 : vector<1x128xi1> to vector<1x128xi1>
    %11 = vector.broadcast %10 : vector<1x128xi1> to vector<8x128xi1>
    %12 = vector.broadcast %cst_2 : f32 to vector<8x128xf32>
    %13 = arith.select %11, %6, %12 : vector<8x128xi1>, vector<8x128xf32>
    %14 = arith.mulf %13, %13 : vector<8x128xf32>
    %cst_3 = arith.constant dense<0.000000e+00> : vector<8xf32>
    %15 = vector.multi_reduction <add>, %14, %cst_3 [1] : vector<8x128xf32> to vector<8xf32>
    %16 = vector.shape_cast %15 : vector<8xf32> to vector<8x1xf32>
    %cst_4 = arith.constant 3.125000e-02 : f32
    %17 = vector.broadcast %cst_4 : f32 to vector<8x1xf32>
    %18 = arith.mulf %16, %17 : vector<8x1xf32>
    %cst_5 = arith.constant 9.99999974E-6 : f32
    %19 = vector.broadcast %cst_5 : f32 to vector<8x1xf32>
    %20 = arith.addf %18, %19 : vector<8x1xf32>
    %21 = math.rsqrt %20 : vector<8x1xf32>
    %22 = vector.broadcast %21 : vector<8x1xf32> to vector<8x128xf32>
    %23 = arith.mulf %13, %22 : vector<8x128xf32>
    %c0_6 = arith.constant 0 : index
    %c0_7 = arith.constant 0 : index
    %24 = vector.load %arg2[%c0_6, %c0_7] : memref<1x128xf32, #tpu.memory_space<vmem>>, vector<1x128xf32>
    %25 = vector.broadcast %24 : vector<1x128xf32> to vector<8x128xf32>
    %26 = arith.mulf %23, %25 : vector<8x128xf32>
    %c0_8 = arith.constant 0 : index
    %c0_9 = arith.constant 0 : index
    %27 = vector.load %arg3[%c0_8, %c0_9] : memref<1x128xf32, #tpu.memory_space<vmem>>, vector<1x128xf32>
    %28 = vector.broadcast %27 : vector<1x128xf32> to vector<8x128xf32>
    %29 = arith.addf %26, %28 : vector<8x128xf32>
    %30 = arith.truncf %29 : vector<8x128xf32> to vector<8x128xbf16>
    %cst_10 = arith.constant 0.000000e+00 : f32
    %31 = vector.broadcast %cst_10 : f32 to vector<8x128xf32>
    %c0_11 = arith.constant 0 : index
    %c0_12 = arith.constant 0 : index
    %32 = vector.load %arg4[%c0_11, %c0_12] : memref<128x128xbf16, #tpu.memory_space<vmem>>, vector<128x128xbf16>
    %cst_13 = arith.constant dense<0.000000e+00> : vector<8x128xf32>
    %33 = tpu.matmul %30, %32, %cst_13 {dimension_numbers = #tpu.dot_dimension_numbers<[1], [0], [0], [1], [0, 0, 1, 1], [], []>} : vector<8x128xbf16>, vector<128x128xbf16>, vector<8x128xf32> -> vector<8x128xf32>
    %c0_14 = arith.constant 0 : index
    %c0_15 = arith.constant 0 : index
    %34 = vector.load %arg5[%c0_14, %c0_15] : memref<1x128xf32, #tpu.memory_space<vmem>>, vector<1x128xf32>
    %35 = vector.broadcast %34 : vector<1x128xf32> to vector<8x128xf32>
    %36 = arith.addf %33, %35 : vector<8x128xf32>
    %37 = arith.negf %36 : vector<8x128xf32>
    %38 = math.exp %37 : vector<8x128xf32>
    %cst_16 = arith.constant 1.000000e+00 : f32
    %39 = vector.broadcast %cst_16 : f32 to vector<8x128xf32>
    %40 = arith.addf %39, %38 : vector<8x128xf32>
    %41 = arith.divf %39, %40 : vector<8x128xf32>
    %42 = arith.mulf %36, %41 : vector<8x128xf32>
    %43 = arith.truncf %42 : vector<8x128xf32> to vector<8x128xbf16>
    %c0_17 = arith.constant 0 : index
    %c0_18 = arith.constant 0 : index
    %44 = vector.load %arg6[%c0_17, %c0_18] : memref<128x128xbf16, #tpu.memory_space<vmem>>, vector<128x128xbf16>
    %cst_19 = arith.constant dense<0.000000e+00> : vector<8x128xf32>
    %45 = tpu.matmul %43, %44, %cst_19 {dimension_numbers = #tpu.dot_dimension_numbers<[1], [0], [0], [1], [0, 0, 1, 1], [], []>} : vector<8x128xbf16>, vector<128x128xbf16>, vector<8x128xf32> -> vector<8x128xf32>
    %46 = arith.addf %31, %45 : vector<8x128xf32>
    %c0_20 = arith.constant 0 : index
    %c0_21 = arith.constant 0 : index
    %47 = vector.load %arg7[%c0_20, %c0_21] : memref<1x128xf32, #tpu.memory_space<vmem>>, vector<1x128xf32>
    %48 = vector.broadcast %47 : vector<1x128xf32> to vector<8x128xf32>
    %49 = arith.addf %46, %48 : vector<8x128xf32>
    %c0_22 = arith.constant 0 : index
    %c0_23 = arith.constant 0 : index
    %50 = vector.load %arg8[%c0_22, %c0_23] : memref<8x128xf32, #tpu.memory_space<vmem>>, vector<8x128xf32>
    tpu.vector_store %arg8[%c0_22, %c0_23], %49 {strides = array<i32>} : memref<8x128xf32, #tpu.memory_space<vmem>>, vector<8x128xf32>,
    return
  }
  func.func @transform_0(%arg0: i32) -> (i32, i32) {
    %c0_i32 = arith.constant 0 : i32
    %c0_i32_0 = arith.constant 0 : i32
    return %arg0, %c0_i32 : i32, i32
  }
  func.func @transform_1(%arg0: i32) -> (i32, i32) {
    %c0_i32 = arith.constant 0 : i32
    %c0_i32_0 = arith.constant 0 : i32
    %c0_i32_1 = arith.constant 0 : i32
    return %c0_i32, %c0_i32_0 : i32, i32
  }
  func.func @transform_2(%arg0: i32) -> (i32, i32) {
    %c0_i32 = arith.constant 0 : i32
    %c0_i32_0 = arith.constant 0 : i32
    %c0_i32_1 = arith.constant 0 : i32
    return %c0_i32, %c0_i32_0 : i32, i32
  }
  func.func @transform_3(%arg0: i32) -> (i32, i32) {
    %c0_i32 = arith.constant 0 : i32
    %c0_i32_0 = arith.constant 0 : i32
    %c0_i32_1 = arith.constant 0 : i32
    return %c0_i32, %c0_i32_0 : i32, i32
  }
  func.func @transform_4(%arg0: i32) -> (i32, i32) {
    %c0_i32 = arith.constant 0 : i32
    %c0_i32_0 = arith.constant 0 : i32
    %c0_i32_1 = arith.constant 0 : i32
    return %c0_i32, %c0_i32_0 : i32, i32
  }
  func.func @transform_5(%arg0: i32) -> (i32, i32) {
    %c0_i32 = arith.constant 0 : i32
    %c0_i32_0 = arith.constant 0 : i32
    %c0_i32_1 = arith.constant 0 : i32
    return %c0_i32, %c0_i32_0 : i32, i32
  }
  func.func @transform_6(%arg0: i32) -> (i32, i32) {
    %c0_i32 = arith.constant 0 : i32
    %c0_i32_0 = arith.constant 0 : i32
    %c0_i32_1 = arith.constant 0 : i32
    return %c0_i32, %c0_i32_0 : i32, i32
  }
  func.func @transform_7(%arg0: i32) -> (i32, i32) {
    %c0_i32 = arith.constant 0 : i32
    %c0_i32_0 = arith.constant 0 : i32
    return %arg0, %c0_i32 : i32, i32
  }
}

</mosaic_0001>

<llo_original>
// kernel: feed_forward_module.1
$region0: #{feed_forward_module.1}
  #allocation0 [shape = 'u32[]', space=smem, size = 0x4, offset = 0x4, fixed_abs, tag = 'smem constant byte address 0x4 - core index']
  #allocation1 [shape = 'u32[144,128]{1,0:T(1,128)}', space=vmem, size = 0x12000, scoped, tag = 'internal scratch']
  %s0 = inlined_call_operand.vmem [shape: f32[16,128], index: 0, kind: input, shape index: {}]
  %s1 = inlined_call_operand.vmem [shape: f32[1,128], index: 1, kind: input, shape index: {}]
  %s2 = inlined_call_operand.vmem [shape: f32[1,128], index: 2, kind: input, shape index: {}]
  %s3 = inlined_call_operand.vmem [shape: bf16[128,128], index: 3, kind: input, shape index: {}]
  %s4 = inlined_call_operand.vmem [shape: f32[1,128], index: 4, kind: input, shape index: {}]
  %s5 = inlined_call_operand.vmem [shape: bf16[128,128], index: 5, kind: input, shape index: {}]
  %s6 = inlined_call_operand.vmem [shape: f32[1,128], index: 6, kind: input, shape index: {}]
  %s7 = inlined_call_operand.vmem [shape: f32[16,128], index: 7, kind: output, shape index: {}]
  %s8 = sld [smem:[#allocation0]]
  $region61: #{feed_forward_module.1} parent=0
    _
  %s10 = ssub.s32 1, %s8
  %s11 = scalar_select 0, %s10, %s8
  loop: start=0, step=1, limit=4
  $region2: #{feed_forward_module.1} parent=0 // loop_pre_header
    _
  $region3: #{feed_forward_module.1} parent=0 // loop_header
    %s13 = sphi 0, %s17
    %p14 = scmp.ge.s32.totalorder %s13, 4
    %s23 = sphi 0, %s25
    %s26 = sphi 0, %s23
    %s27 = sphi 0, %s26
    %s43 = sphi 0, %s27
    %s47 = sphi 0, %s47
    %s49 = sphi 0, %s47
    %s50 = sphi 0, %s49
    %s64 = sphi 0, %s50
    %s68 = sphi 0, %s68
    %s70 = sphi 0, %s68
    %s71 = sphi 0, %s70
    %s85 = sphi 0, %s71
    %s89 = sphi 0, %s89
    %s91 = sphi 0, %s89
    %s92 = sphi 0, %s91
    %s106 = sphi 0, %s92
    %s110 = sphi 0, %s110
    %s112 = sphi 0, %s110
    %s113 = sphi 0, %s112
    %s127 = sphi 0, %s113
    %s131 = sphi 0, %s131
    %s133 = sphi 0, %s131
    %s134 = sphi 0, %s133
    %s148 = sphi 0, %s134
    %s152 = sphi 0, %s152
    %s154 = sphi 0, %s152
    %s155 = sphi 0, %s154
    %s169 = sphi 0, %s155
    %s175 = sphi 0, %s177
    %s178 = sphi 0, %s175
    %s179 = sphi 0, %s178
    %s195 = sphi 0, %s179
  $region4: #{feed_forward_module.1} parent=0 // loop_header_branch
    %16 = sbr.rel (%p14) target = $region8
  $region5: #{feed_forward_module.1} parent=0 // loop_body
    %s18 = ssub.s32 %s13, 1
    %s19 = ssub.s32 %s13, 2
    %s20 = sadd.s32 %s13, 1
    %s21 = ssub.s32 %s13, %s20
    %p22 = scmp.eq.s32.totalorder %s21, 0
    %s24 = sadd.s32 %s23, 1
    %s25 = scalar_select %p22, %s23, %s24
    %p28 = pneg %p22
    %p29 = scmp.eq.s32.totalorder %s13, 1
    %p30 = por %p28, %p29
    %p31 = scmp.ne.s32.totalorder %s23, %s26
    %p32 = scmp.eq.s32.totalorder %s13, 0
    %p33 = por %p31, %p32
    %p34 = scmp.ne.s32.totalorder %s23, %s26
    %p35 = scmp.eq.s32.totalorder %s18, 1
    %p36 = por %p34, %p35
    %p37 = scmp.ne.s32.totalorder %s26, %s27
    %p38 = scmp.eq.s32.totalorder %s18, 0
    %p39 = por %p37, %p38
    %p40 = scmp.ne.s32.totalorder %s26, %s27
    %p41 = scmp.eq.s32.totalorder %s19, 1
    %p42 = por %p40, %p41
    %p44 = scmp.ne.s32.totalorder %s27, %s43
    %p45 = scmp.eq.s32.totalorder %s19, 0
    %p46 = por %p44, %p45
    %s48 = sadd.s32 %s47, 1
    %p51 = scmp.eq.s32.totalorder %s13, 1
    %p52 = scmp.ne.s32.totalorder %s47, %s49
    %p53 = scmp.eq.s32.totalorder %s13, 0
    %p54 = por %p52, %p53
    %p55 = scmp.ne.s32.totalorder %s47, %s49
    %p56 = scmp.eq.s32.totalorder %s18, 1
    %p57 = por %p55, %p56
    %p58 = scmp.ne.s32.totalorder %s49, %s50
    %p59 = scmp.eq.s32.totalorder %s18, 0
    %p60 = por %p58, %p59
    %p61 = scmp.ne.s32.totalorder %s49, %s50
    %p62 = scmp.eq.s32.totalorder %s19, 1
    %p63 = por %p61, %p62
    %p65 = scmp.ne.s32.totalorder %s50, %s64
    %p66 = scmp.eq.s32.totalorder %s19, 0
    %p67 = por %p65, %p66
    %s69 = sadd.s32 %s68, 1
    %p72 = scmp.eq.s32.totalorder %s13, 1
    %p73 = scmp.ne.s32.totalorder %s68, %s70
    %p74 = scmp.eq.s32.totalorder %s13, 0
    %p75 = por %p73, %p74
    %p76 = scmp.ne.s32.totalorder %s68, %s70
    %p77 = scmp.eq.s32.totalorder %s18, 1
    %p78 = por %p76, %p77
    %p79 = scmp.ne.s32.totalorder %s70, %s71
    %p80 = scmp.eq.s32.totalorder %s18, 0
    %p81 = por %p79, %p80
    %p82 = scmp.ne.s32.totalorder %s70, %s71
    %p83 = scmp.eq.s32.totalorder %s19, 1
    %p84 = por %p82, %p83
    %p86 = scmp.ne.s32.totalorder %s71, %s85
    %p87 = scmp.eq.s32.totalorder %s19, 0
    %p88 = por %p86, %p87
    %s90 = sadd.s32 %s89, 1
    %p93 = scmp.eq.s32.totalorder %s13, 1
    %p94 = scmp.ne.s32.totalorder %s89, %s91
    %p95 = scmp.eq.s32.totalorder %s13, 0
    %p96 = por %p94, %p95
    %p97 = scmp.ne.s32.totalorder %s89, %s91
    %p98 = scmp.eq.s32.totalorder %s18, 1
    %p99 = por %p97, %p98
    %p100 = scmp.ne.s32.totalorder %s91, %s92
    %p101 = scmp.eq.s32.totalorder %s18, 0
    %p102 = por %p100, %p101
    %p103 = scmp.ne.s32.totalorder %s91, %s92
    %p104 = scmp.eq.s32.totalorder %s19, 1
    %p105 = por %p103, %p104
    %p107 = scmp.ne.s32.totalorder %s92, %s106
    %p108 = scmp.eq.s32.totalorder %s19, 0
    %p109 = por %p107, %p108
    %s111 = sadd.s32 %s110, 1
    %p114 = scmp.eq.s32.totalorder %s13, 1
    %p115 = scmp.ne.s32.totalorder %s110, %s112
    %p116 = scmp.eq.s32.totalorder %s13, 0
    %p117 = por %p115, %p116
    %p118 = scmp.ne.s32.totalorder %s110, %s112
    %p119 = scmp.eq.s32.totalorder %s18, 1
    %p120 = por %p118, %p119
    %p121 = scmp.ne.s32.totalorder %s112, %s113
    %p122 = scmp.eq.s32.totalorder %s18, 0
    %p123 = por %p121, %p122
    %p124 = scmp.ne.s32.totalorder %s112, %s113
    %p125 = scmp.eq.s32.totalorder %s19, 1
    %p126 = por %p124, %p125
    %p128 = scmp.ne.s32.totalorder %s113, %s127
    %p129 = scmp.eq.s32.totalorder %s19, 0
    %p130 = por %p128, %p129
    %s132 = sadd.s32 %s131, 1
    %p135 = scmp.eq.s32.totalorder %s13, 1
    %p136 = scmp.ne.s32.totalorder %s131, %s133
    %p137 = scmp.eq.s32.totalorder %s13, 0
    %p138 = por %p136, %p137
    %p139 = scmp.ne.s32.totalorder %s131, %s133
    %p140 = scmp.eq.s32.totalorder %s18, 1
    %p141 = por %p139, %p140
    %p142 = scmp.ne.s32.totalorder %s133, %s134
    %p143 = scmp.eq.s32.totalorder %s18, 0
    %p144 = por %p142, %p143
    %p145 = scmp.ne.s32.totalorder %s133, %s134
    %p146 = scmp.eq.s32.totalorder %s19, 1
    %p147 = por %p145, %p146
    %p149 = scmp.ne.s32.totalorder %s134, %s148
    %p150 = scmp.eq.s32.totalorder %s19, 0
    %p151 = por %p149, %p150
    %s153 = sadd.s32 %s152, 1
    %p156 = scmp.eq.s32.totalorder %s13, 1
    %p157 = scmp.ne.s32.totalorder %s152, %s154
    %p158 = scmp.eq.s32.totalorder %s13, 0
    %p159 = por %p157, %p158
    %p160 = scmp.ne.s32.totalorder %s152, %s154
    %p161 = scmp.eq.s32.totalorder %s18, 1
    %p162 = por %p160, %p161
    %p163 = scmp.ne.s32.totalorder %s154, %s155
    %p164 = scmp.eq.s32.totalorder %s18, 0
    %p165 = por %p163, %p164
    %p166 = scmp.ne.s32.totalorder %s154, %s155
    %p167 = scmp.eq.s32.totalorder %s19, 1
    %p168 = por %p166, %p167
    %p170 = scmp.ne.s32.totalorder %s155, %s169
    %p171 = scmp.eq.s32.totalorder %s19, 0
    %p172 = por %p170, %p171
    %s173 = ssub.s32 %s13, %s20
    %p174 = scmp.eq.s32.totalorder %s173, 0
    %s176 = sadd.s32 %s175, 1
    %s177 = scalar_select %p174, %s175, %s176
    %p180 = pneg %p174
    %p181 = scmp.eq.s32.totalorder %s13, 1
    %p182 = por %p180, %p181
    %p183 = scmp.ne.s32.totalorder %s175, %s178
    %p184 = scmp.eq.s32.totalorder %s13, 0
    %p185 = por %p183, %p184
    %p186 = scmp.ne.s32.totalorder %s175, %s178
    %p187 = scmp.eq.s32.totalorder %s18, 1
    %p188 = por %p186, %p187
    %p189 = scmp.ne.s32.totalorder %s178, %s179
    %p190 = scmp.eq.s32.totalorder %s18, 0
    %p191 = por %p189, %p190
    %p192 = scmp.ne.s32.totalorder %s178, %s179
    %p193 = scmp.eq.s32.totalorder %s19, 1
    %p194 = por %p192, %p193
    %p196 = scmp.ne.s32.totalorder %s179, %s195
    %p197 = scmp.eq.s32.totalorder %s19, 0
    %p198 = por %p196, %p197
    %p199 = scmp.le.s32.totalorder 1, %s13
    %p200 = scmp.lt.s32.totalorder %s13, 3
    %p201 = pnand %p199, %p200
    %p202 = pneg %p201
    // Predicated region
    $region9: #{feed_forward_module.1} parent=5 // pred_check
      _
    $region10: #{feed_forward_module.1} parent=5 // pred_check_branch
      %204 = sbr.rel (%p201) target = $region12
    $region11: #{feed_forward_module.1} parent=5 // pred_region
      %s205 = ssub.s32 %s13, 1
      // Predicated region
      $region13: #{feed_forward_module.1} parent=11 // pred_check
        %p206 = pneg %p60
      $region14: #{feed_forward_module.1} parent=11 // pred_check_branch
        %208 = sbr.rel (%p206) target = $region16
      $region15: #{feed_forward_module.1} parent=11 // pred_region
        _
      $region16: #{feed_forward_module.1} parent=11 // pred_fallthru
        _
      // Predicated region
      $region17: #{feed_forward_module.1} parent=11 // pred_check
        %p209 = pneg %p81
      $region18: #{feed_forward_module.1} parent=11 // pred_check_branch
        %211 = sbr.rel (%p209) target = $region20
      $region19: #{feed_forward_module.1} parent=11 // pred_region
        _
      $region20: #{feed_forward_module.1} parent=11 // pred_fallthru
        _
      // Predicated region
      $region21: #{feed_forward_module.1} parent=11 // pred_check
        %p212 = pneg %p102
      $region22: #{feed_forward_module.1} parent=11 // pred_check_branch
        %214 = sbr.rel (%p212) target = $region24
      $region23: #{feed_forward_module.1} parent=11 // pred_region
        _
      $region24: #{feed_forward_module.1} parent=11 // pred_fallthru
        _
      // Predicated region
      $region25: #{feed_forward_module.1} parent=11 // pred_check
        %p215 = pneg %p123
      $region26: #{feed_forward_module.1} parent=11 // pred_check_branch
        %217 = sbr.rel (%p215) target = $region28
      $region27: #{feed_forward_module.1} parent=11 // pred_region
        _
      $region28: #{feed_forward_module.1} parent=11 // pred_fallthru
        _
      // Predicated region
      $region29: #{feed_forward_module.1} parent=11 // pred_check
        %p218 = pneg %p144
      $region30: #{feed_forward_module.1} parent=11 // pred_check_branch
        %220 = sbr.rel (%p218) target = $region32
      $region31: #{feed_forward_module.1} parent=11 // pred_region
        _
      $region32: #{feed_forward_module.1} parent=11 // pred_fallthru
        _
      // Predicated region
      $region33: #{feed_forward_module.1} parent=11 // pred_check
        %p221 = pneg %p165
      $region34: #{feed_forward_module.1} parent=11 // pred_check_branch
        %223 = sbr.rel (%p221) target = $region36
      $region35: #{feed_forward_module.1} parent=11 // pred_region
        _
      $region36: #{feed_forward_module.1} parent=11 // pred_fallthru
        _
    $region12: #{feed_forward_module.1} parent=5 // pred_fallthru
      _
    %p224 = scmp.lt.s32.totalorder %s13, 2
    // Predicated region
    $region37: #{feed_forward_module.1} parent=5 // pred_check
      %p225 = pneg %p224
    $region38: #{feed_forward_module.1} parent=5 // pred_check_branch
      %227 = sbr.rel (%p225) target = $region40
    $region39: #{feed_forward_module.1} parent=5 // pred_region
      // Predicated region
      $region41: #{feed_forward_module.1} parent=39 // pred_check
        %p228 = pneg %p33
      $region42: #{feed_forward_module.1} parent=39 // pred_check_branch
        %230 = sbr.rel (%p228) target = $region44
      $region43: #{feed_forward_module.1} parent=39 // pred_region
        %p231 = scmp.lt.s32.totalorder %s13, 1
        %s232 = scalar_select %p231, %s13, 1
        %s233 = smul.addr %s232, 8
        %s234 = scalar_lea.vmem %s0, %s233
      $region44: #{feed_forward_module.1} parent=39 // pred_fallthru
        _
    $region40: #{feed_forward_module.1} parent=5 // pred_fallthru
      _
    %p235 = scmp.le.s32.totalorder 1, %s13
    %p236 = scmp.lt.s32.totalorder %s13, 3
    %p237 = pnand %p235, %p236
    %p238 = pneg %p237
    // Predicated region
    $region45: #{feed_forward_module.1} parent=5 // pred_check
      _
    $region46: #{feed_forward_module.1} parent=5 // pred_check_branch
      %240 = sbr.rel (%p237) target = $region48
    $region47: #{feed_forward_module.1} parent=5 // pred_region
      %s241 = ssub.s32 %s13, 1
      %p242 = scmp.lt.s32.totalorder %s18, 1
      %s243 = scalar_select %p242, %s18, 1
      %s244 = smul.addr %s243, 8
      %s245 = scalar_lea.vmem %s0, %s244
      %p246 = pneg %p39
      %p247 = pneg %p36
      %p248 = pneg %p60
      %p249 = pneg %p57
      %p250 = pneg %p81
      %p251 = pneg %p78
      %p252 = pneg %p102
      %p253 = pneg %p99
      %p254 = pneg %p123
      %p255 = pneg %p120
      %p256 = pneg %p144
      %p257 = pneg %p141
      %p258 = pneg %p165
      %p259 = pneg %p162
      %p260 = pneg %p191
      %p261 = pneg %p188
      %p262 = scmp.lt.s32.totalorder %s18, 1
      %s263 = scalar_select %p262, %s18, 1
      %s264 = smul.addr %s263, 8
      %s265 = scalar_lea.vmem %s7, %s264
      %p266 = scmp.lt.s32.totalorder %s18, 1
      %s267 = scalar_select %p266, %s18, 1
      %s268 = smul.addr %s267, 8
      %s269 = scalar_lea.vmem %s0, %s268
      %p270 = scmp.lt.s32.totalorder %s18, 1
      %s271 = scalar_select %p270, %s18, 1
      %s272 = smul.addr %s271, 8
      %s273 = scalar_lea.vmem %s7, %s272
      %v275 = vld [vmem:[%s269] sm:$0xff]
      %276 = vadd.xlane.f32.xlu0 %v275
      %v277 = vpop.xlane.xlu0 %276
      %v278 = vmul.f32 %v277, 0.03125
      %v279 = vsub.f32 %v275, %v278
      %v280 = vlaneseq
      %v281 = vand.u32 %v280, 127
      %vm282 = vcmp.lt.s32.totalorder %v281, 32
      %v283 = vsel %vm282, 1, 0
      %vm284 = vcmp.eq.s32.totalorder %v283, 1
      %v285 = vsel %vm284, %v279, 0.0
      %v286 = vmul.f32 %v285, %v285
      %287 = vadd.xlane.f32.xlu0 %v286
      %v288 = vpop.xlane.xlu0 %287
      %v289 = vmul.f32 %v288, 0.03125
      %v290 = vadd.f32 %v289, 1e-05
      %v291 = vrsqrt.pop %v290
      %v292 = vmul.f32 %v285, %v291
      %v293 = vld [vmem:[%s1] sm:$0x1]
      %v295 = vlaneseq
      %v296 = vshrl.u32 %v295, 7
      %v297 = vsub.s32 0, %v296
      %v298 = vrot.slane %v293, %v297
      %v300 = vmul.f32 %v292, %v298
      %v301 = vld [vmem:[%s2] sm:$0x1]
      %v303 = vlaneseq
      %v304 = vshrl.u32 %v303, 7
      %v305 = vsub.s32 0, %v304
      %v306 = vrot.slane %v301, %v305
      %v308 = vadd.f32 %v300, %v306
      %v309 = vpack.c.bf16 %v308, %v308
      %v310 = vld [vmem:[%s3] sm:$0xf]
      %v311 = vld [vmem:[%s3 + $0x4] sm:$0xf]
      %v312 = vld [vmem:[%s3 + $0x8] sm:$0xf]
      %v313 = vld [vmem:[%s3 + $0xc] sm:$0xf]
      %v314 = vld [vmem:[%s3 + $0x10] sm:$0xf]
      %v315 = vld [vmem:[%s3 + $0x14] sm:$0xf]
      %v316 = vld [vmem:[%s3 + $0x18] sm:$0xf]
      %v317 = vld [vmem:[%s3 + $0x1c] sm:$0xf]
      %v318 = vld [vmem:[%s3 + $0x20] sm:$0xf]
      %v319 = vld [vmem:[%s3 + $0x24] sm:$0xf]
      %v320 = vld [vmem:[%s3 + $0x28] sm:$0xf]
      %v321 = vld [vmem:[%s3 + $0x2c] sm:$0xf]
      %v322 = vld [vmem:[%s3 + $0x30] sm:$0xf]
      %v323 = vld [vmem:[%s3 + $0x34] sm:$0xf]
      %v324 = vld [vmem:[%s3 + $0x38] sm:$0xf]
      %v325 = vld [vmem:[%s3 + $0x3c] sm:$0xf]
      %v326 = vld [vmem:[%s4] sm:$0x1]
      %v328 = vlaneseq
      %v329 = vshrl.u32 %v328, 7
      %v330 = vsub.s32 0, %v329
      %v331 = vrot.slane %v326, %v330
      %v349 = vunpack.c.l.b16 %v310
      %v350 = vunpack.c.l.b16 %v311
      %v351 = vunpack.c.l.b16 %v312
      %v352 = vunpack.c.l.b16 %v313
      %v353 = vunpack.c.l.b16 %v314
      %v354 = vunpack.c.l.b16 %v315
      %v355 = vunpack.c.l.b16 %v316
      %v356 = vunpack.c.l.b16 %v317
      %v357 = vunpack.c.l.b16 %v318
      %v358 = vunpack.c.l.b16 %v319
      %v359 = vunpack.c.l.b16 %v320
      %v360 = vunpack.c.l.b16 %v321
      %v361 = vunpack.c.l.b16 %v322
      %v362 = vunpack.c.l.b16 %v323
      %v363 = vunpack.c.l.b16 %v324
      %v364 = vunpack.c.l.b16 %v325
      %v365 = vpack.c.b16 %v350, %v349
      %v366 = vpack.c.b16 %v352, %v351
      %v367 = vpack.c.b16 %v354, %v353
      %v368 = vpack.c.b16 %v356, %v355
      %v369 = vpack.c.b16 %v358, %v357
      %v370 = vpack.c.b16 %v360, %v359
      %v371 = vpack.c.b16 %v362, %v361
      %v372 = vpack.c.b16 %v364, %v363
      %381 = vmatprep.subr.bf16.mxu0 0
      %382 = vmatpush1.bf16.msra.mxu0 %v372
      %383 = vmatprep.subr.bf16.mxu0 0
      %384 = vmatpush1.bf16.msra.mxu0 %v371
      %385 = vmatprep.subr.bf16.mxu0 0
      %386 = vmatpush1.bf16.msra.mxu0 %v370
      %387 = vmatprep.subr.bf16.mxu0 0
      %388 = vmatpush1.bf16.msra.mxu0 %v369
      %389 = vmatprep.subr.bf16.mxu0 0
      %390 = vmatpush1.bf16.msra.mxu0 %v368
      %391 = vmatprep.subr.bf16.mxu0 0
      %392 = vmatpush1.bf16.msra.mxu0 %v367
      %393 = vmatprep.subr.bf16.mxu0 0
      %394 = vmatpush1.bf16.msra.mxu0 %v366
      %395 = vmatprep.subr.bf16.mxu0 0
      %396 = vmatpush1.bf16.msra.mxu0 %v365
      %397 = vmatprep.subr.bf16.mxu0 0
      %398 = vmatpush2.bf16.msra.mxu0 0
      %399 = vmatprep.subr.bf16.mxu0 0
      %400 = vmatpush2.bf16.msra.mxu0 0
      %401 = vmatprep.subr.bf16.mxu0 0
      %402 = vmatpush2.bf16.msra.mxu0 0
      %403 = vmatprep.subr.bf16.mxu0 0
      %404 = vmatpush2.bf16.msra.mxu0 0
      %405 = vmatprep.subr.bf16.mxu0 0
      %406 = vmatpush2.bf16.msra.mxu0 0
      %407 = vmatprep.subr.bf16.mxu0 0
      %408 = vmatpush2.bf16.msra.mxu0 0
      %409 = vmatprep.subr.bf16.mxu0 0
      %410 = vmatpush2.bf16.msra.mxu0 0
      %411 = vmatprep.subr.bf16.mxu0 0
      %412 = vmatpush2.bf16.msra.mxu0 0
      %413 = vmatprep.mubr.bf16.mxu0 0
      %414 = vmatmul.mubr.bf16.gmra.mxu0 %v309
      %v415 = vpop.f32.mrf.mxu0
      %v416 = vadd.f32 %v331, %v415
      %v417 = vpop.f32.mrf.mxu0
      %v418 = vpop.f32.mrf.mxu0
      %v419 = vpop.f32.mrf.mxu0
      %420 = vdwg.mxu0
      %v421 = vxor.u32 %v416, 2147483648
      %v422 = vmul.f32 %v421, 1.442695
      %v423 = vpow.pop %v422
      %v424 = vadd.f32 %v423, 1.0
      %v425 = vrcp.pop %v424
      %v426 = vmul.f32 1.0, %v425
      %v427 = vmul.f32 %v416, %v426
      %v428 = vpack.c.bf16 %v427, %v427
      %v429 = vld [vmem:[%s5] sm:$0xf]
      %v430 = vld [vmem:[%s5 + $0x4] sm:$0xf]
      %v431 = vld [vmem:[%s5 + $0x8] sm:$0xf]
      %v432 = vld [vmem:[%s5 + $0xc] sm:$0xf]
      %v433 = vld [vmem:[%s5 + $0x10] sm:$0xf]
      %v434 = vld [vmem:[%s5 + $0x14] sm:$0xf]
      %v435 = vld [vmem:[%s5 + $0x18] sm:$0xf]
      %v436 = vld [vmem:[%s5 + $0x1c] sm:$0xf]
      %v437 = vld [vmem:[%s5 + $0x20] sm:$0xf]
      %v438 = vld [vmem:[%s5 + $0x24] sm:$0xf]
      %v439 = vld [vmem:[%s5 + $0x28] sm:$0xf]
      %v440 = vld [vmem:[%s5 + $0x2c] sm:$0xf]
      %v441 = vld [vmem:[%s5 + $0x30] sm:$0xf]
      %v442 = vld [vmem:[%s5 + $0x34] sm:$0xf]
      %v443 = vld [vmem:[%s5 + $0x38] sm:$0xf]
      %v444 = vld [vmem:[%s5 + $0x3c] sm:$0xf]
      %v445 = vld [vmem:[%s6] sm:$0x1]
      %v447 = vlaneseq
      %v448 = vshrl.u32 %v447, 7
      %v449 = vsub.s32 0, %v448
      %v450 = vrot.slane %v445, %v449
      %v468 = vunpack.c.l.b16 %v429
      %v469 = vunpack.c.l.b16 %v430
      %v470 = vunpack.c.l.b16 %v431
      %v471 = vunpack.c.l.b16 %v432
      %v472 = vunpack.c.l.b16 %v433
      %v473 = vunpack.c.l.b16 %v434
      %v474 = vunpack.c.l.b16 %v435
      %v475 = vunpack.c.l.b16 %v436
      %v476 = vunpack.c.l.b16 %v437
      %v477 = vunpack.c.l.b16 %v438
      %v478 = vunpack.c.l.b16 %v439
      %v479 = vunpack.c.l.b16 %v440
      %v480 = vunpack.c.l.b16 %v441
      %v481 = vunpack.c.l.b16 %v442
      %v482 = vunpack.c.l.b16 %v443
      %v483 = vunpack.c.l.b16 %v444
      %v484 = vpack.c.b16 %v469, %v468
      %v485 = vpack.c.b16 %v471, %v470
      %v486 = vpack.c.b16 %v473, %v472
      %v487 = vpack.c.b16 %v475, %v474
      %v488 = vpack.c.b16 %v477, %v476
      %v489 = vpack.c.b16 %v479, %v478
      %v490 = vpack.c.b16 %v481, %v480
      %v491 = vpack.c.b16 %v483, %v482
      %500 = vmatprep.subr.bf16.mxu0 0
      %501 = vmatpush1.bf16.msra.mxu0 %v491
      %502 = vmatprep.subr.bf16.mxu0 0
      %503 = vmatpush1.bf16.msra.mxu0 %v490
      %504 = vmatprep.subr.bf16.mxu0 0
      %505 = vmatpush1.bf16.msra.mxu0 %v489
      %506 = vmatprep.subr.bf16.mxu0 0
      %507 = vmatpush1.bf16.msra.mxu0 %v488
      %508 = vmatprep.subr.bf16.mxu0 0
      %509 = vmatpush1.bf16.msra.mxu0 %v487
      %510 = vmatprep.subr.bf16.mxu0 0
      %511 = vmatpush1.bf16.msra.mxu0 %v486
      %512 = vmatprep.subr.bf16.mxu0 0
      %513 = vmatpush1.bf16.msra.mxu0 %v485
      %514 = vmatprep.subr.bf16.mxu0 0
      %515 = vmatpush1.bf16.msra.mxu0 %v484
      %516 = vmatprep.subr.bf16.mxu0 0
      %517 = vmatpush2.bf16.msra.mxu0 0
      %518 = vmatprep.subr.bf16.mxu0 0
      %519 = vmatpush2.bf16.msra.mxu0 0
      %520 = vmatprep.subr.bf16.mxu0 0
      %521 = vmatpush2.bf16.msra.mxu0 0
      %522 = vmatprep.subr.bf16.mxu0 0
      %523 = vmatpush2.bf16.msra.mxu0 0
      %524 = vmatprep.subr.bf16.mxu0 0
      %525 = vmatpush2.bf16.msra.mxu0 0
      %526 = vmatprep.subr.bf16.mxu0 0
      %527 = vmatpush2.bf16.msra.mxu0 0
      %528 = vmatprep.subr.bf16.mxu0 0
      %529 = vmatpush2.bf16.msra.mxu0 0
      %530 = vmatprep.subr.bf16.mxu0 0
      %531 = vmatpush2.bf16.msra.mxu0 0
      %532 = vmatprep.mubr.bf16.mxu0 0
      %533 = vmatmul.mubr.bf16.gmra.mxu0 %v428
      %v534 = vpop.f32.mrf.mxu0
      %v535 = vadd.f32 %v450, %v534
      %v536 = vpop.f32.mrf.mxu0
      %v537 = vpop.f32.mrf.mxu0
      %v538 = vpop.f32.mrf.mxu0
      %539 = vdwg.mxu0
      %540 = vst [vmem:[%s273] sm:$0xff] %v535
      %p541 = scmp.lt.s32.totalorder %s18, 1
      %s542 = scalar_select %p541, %s18, 1
      %s543 = smul.addr %s542, 8
      %s544 = scalar_lea.vmem %s7, %s543
      // Predicated region
      $region49: #{feed_forward_module.1} parent=47 // pred_check
        %p545 = pneg %p188
      $region50: #{feed_forward_module.1} parent=47 // pred_check_branch
        %547 = sbr.rel (%p545) target = $region52
      $region51: #{feed_forward_module.1} parent=47 // pred_region
        _
      $region52: #{feed_forward_module.1} parent=47 // pred_fallthru
        _
    $region48: #{feed_forward_module.1} parent=5 // pred_fallthru
      _
    %p548 = scmp.le.s32.totalorder 2, %s13
    // Predicated region
    $region53: #{feed_forward_module.1} parent=5 // pred_check
      %p549 = pneg %p548
    $region54: #{feed_forward_module.1} parent=5 // pred_check_branch
      %551 = sbr.rel (%p549) target = $region56
    $region55: #{feed_forward_module.1} parent=5 // pred_region
      %s552 = ssub.s32 %s13, 2
      // Predicated region
      $region57: #{feed_forward_module.1} parent=55 // pred_check
        %p553 = pneg %p194
      $region58: #{feed_forward_module.1} parent=55 // pred_check_branch
        %555 = sbr.rel (%p553) target = $region60
      $region59: #{feed_forward_module.1} parent=55 // pred_region
        %p556 = scmp.lt.s32.totalorder %s19, 1
        %s557 = scalar_select %p556, %s19, 1
        %s558 = smul.addr %s557, 8
        %s559 = scalar_lea.vmem %s7, %s558
      $region60: #{feed_forward_module.1} parent=55 // pred_fallthru
        _
    $region56: #{feed_forward_module.1} parent=5 // pred_fallthru
      _
  $region6: #{feed_forward_module.1} parent=0 // loop_footer
    %s17 = sadd.s32 1, %s13
  $region7: #{feed_forward_module.1} parent=0 // loop_footer_branch
    %12 = sbr.rel target = $region3
  $region8: #{feed_forward_module.1} parent=0 // loop_exit
    _

</llo_original>
